<compile_context>
chip_gen: v7x
topology: tpu7x:2x2x1
jax: 0.10.0
libtpu: 0.0.40
codegen_flags: <defaults>
</compile_context>

<pallas_src>
import jax
import jax.numpy as jnp
import numpy as np
from jax.experimental import pallas as pl
from jax.experimental.pallas import tpu as pltpu

EPS = 1e-5
_LANES = 128


# --------------------------------------------------------------------------- #
# Per-generation VMEM configuration
# --------------------------------------------------------------------------- #
def _vmem_config():
    """Returns (vmem_limit_bytes, per-grid-step tile budget) for this chip."""
    try:
        cap = getattr(pltpu.get_tpu_info(), "vmem_capacity_bytes", None)
    except Exception:
        cap = None
    if cap is None:
        cap = 64 * 1024 * 1024                      # assume smallest (v7x) if unknown
    if cap >= 96 * 1024 * 1024:                     # v5e / v6e: 128 MiB physical VMEM
        return 96 * 1024 * 1024, 40 * 1024 * 1024
    return 32 * 1024 * 1024, 10 * 1024 * 1024       # v7x: 64 MiB physical VMEM


# --------------------------------------------------------------------------- #
# Kernel helpers
# --------------------------------------------------------------------------- #
def _partial_stats_store(stats_ref, acc):
    """Write [sum; sum_sq; 0...] of the f32 acc as ONE aligned (1, 8, C) block."""
    c = acc.shape[-1]
    s = jnp.sum(acc, axis=0, keepdims=True)
    sq = jnp.sum(acc * acc, axis=0, keepdims=True)
    block = jnp.concatenate([s, sq, jnp.zeros((6, c), jnp.float32)], axis=0)
    stats_ref[...] = block.reshape(stats_ref.shape)


def _bn_scale_shift(stats_ref, g_ref, bt_ref, inv_count):
    """Training-mode BN (biased variance, eps=1e-5) as per-channel scale/shift."""
    mean = stats_ref[0:1, :] * inv_count
    ex2 = stats_ref[1:2, :] * inv_count
    # TODO(synk): E[x^2]-E[x]^2 in f32 can lose precision for very large N*L;
    # switch to a shifted/compensated sum if sizes grow.
    var = jnp.maximum(ex2 - mean * mean, 0.0)
    inv_std = jax.lax.rsqrt(var + EPS)
    scale = g_ref[...] * inv_std
    shift = bt_ref[...] - mean * scale
    return scale, shift


def _tap_matmul(slab, w_ref, l_out, c_out):
    """sum_k slab[:, k:k+l_out, :] @ w[k] -- bf16 operands, f32 accumulation."""
    n_t = slab.shape[0]
    c_in = slab.shape[2]
    K = w_ref.shape[0]
    rows = n_t * l_out
    acc = jnp.zeros((rows, c_out), jnp.float32)
    for k in range(K):
        xk = slab[:, k:k + l_out, :].reshape(rows, c_in)
        acc = acc + jnp.dot(xk, w_ref[k], preferred_element_type=jnp.float32)
    return acc


# --------------------------------------------------------------------------- #
# Kernels
# --------------------------------------------------------------------------- #
def _make_conv_stats_kernel():
    """Conv1d (per-tap bf16 MXU dots, bias dropped) + per-tile BN partial stats."""

    def kernel(xp_ref, w_ref, conv_ref, stats_ref):
        n_t, l_out, c_out = conv_ref.shape
        acc = _tap_matmul(xp_ref, w_ref, l_out, c_out)
        _partial_stats_store(stats_ref, acc)
        conv_ref[...] = acc.reshape(n_t, l_out, c_out).astype(conv_ref.dtype)

    return kernel


def _make_bn_relu_conv_stats_kernel(pad, count):
    """Fused: BN1(train)+ReLU, zero halo in registers, Conv2 + partial BN2 stats."""
    inv_count = 1.0 / float(count)

    def kernel(h_ref, stats_ref, g_ref, bt_ref, w_ref, conv_ref, stats2_ref):
        n_t, _, c1 = h_ref.shape
        _, l_out, c2 = conv_ref.shape
        scale, shift = _bn_scale_shift(stats_ref, g_ref, bt_ref, inv_count)
        y = h_ref[...].astype(jnp.float32) * scale.reshape(1, 1, c1) \
            + shift.reshape(1, 1, c1)
        y = jnp.maximum(y, 0.0).astype(jnp.bfloat16)
        if pad > 0:
            halo = jnp.zeros((n_t, pad, c1), jnp.bfloat16)
            slab = jnp.concatenate([halo, y, halo], axis=1)
        else:
            slab = y
        acc = _tap_matmul(slab, w_ref, l_out, c2)
        _partial_stats_store(stats2_ref, acc)
        conv_ref[...] = acc.reshape(n_t, l_out, c2).astype(conv_ref.dtype)

    return kernel


def _make_bn_relu_kernel(count):
    """BatchNorm1d (training stats) + ReLU; single aligned full-block store."""
    inv_count = 1.0 / float(count)

    def kernel(h_ref, stats_ref, g_ref, bt_ref, o_ref):
        c = h_ref.shape[2]
        scale, shift = _bn_scale_shift(stats_ref, g_ref, bt_ref, inv_count)
        y = h_ref[...].astype(jnp.float32) * scale.reshape(1, 1, c) \
            + shift.reshape(1, 1, c)
        o_ref[...] = jnp.maximum(y, 0.0).astype(o_ref.dtype)

    return kernel


# --------------------------------------------------------------------------- #
# Wrappers
# --------------------------------------------------------------------------- #
def _round_up(x, m):
    return ((x + m - 1) // m) * m


def _pad_weight(w, cp_in, cp_out):
    """(Cout, Cin, K) PyTorch layout -> (K, Cp_in, Cp_out) bf16, zero padded."""
    c_out, c_in, _ = w.shape
    w_kic = jnp.transpose(w, (2, 1, 0))
    w_kic = jnp.pad(w_kic, ((0, 0), (0, cp_in - c_in), (0, cp_out - c_out)))
    return w_kic.astype(jnp.bfloat16)


def _pad_vec(v, cp):
    return jnp.pad(v, (0, cp - v.shape[0])).reshape(1, cp).astype(jnp.float32)


def _pick_batch_tile(N, l_outs, K, c_max, tile_budget, max_batch_tile=None):
    """Largest divisor of N whose per-grid-step working set fits the budget."""
    # TODO(synk): pad L_out to a multiple of 8 (with row masking of the stats) and
    # allow non-divisor tiles via a cdiv grid; both only matter for awkward shapes
    # that this fallback handles slowly-but-correctly.
    if any(l % 8 for l in l_outs):
        return 1
    limit = N if max_batch_tile is None else max(1, min(N, int(max_batch_tile)))
    l_max = max(l_outs)
    lp = l_max + K - 1
    per_row = (2 * 2 * lp * c_max * 2          # input block, 2 buffers, bf16
               + 2 * 2 * l_max * c_max * 2     # output block, 2 buffers, bf16
               + 2 * lp * c_max * 2            # in-register slab / tap temps, bf16
               + 2 * l_max * c_max * 4)        # f32 accumulator + f32 BN temp
    fixed = 2 * K * c_max * c_max * 2 + 4 * 8 * c_max * 4
    for d in range(limit, 0, -1):
        if N % d == 0 and d * per_row + fixed <= tile_budget:
            return d
    return 1


def conv_block_forward(x_ncl, params, padding=1, max_batch_tile=None):
    """Matches ConvBlock.forward (training-mode BN). x_ncl: (N,Cin,L) -> (N,Cout,L)."""
    N, c_in, L = x_ncl.shape
    c_out1, _, K = params['w1'].shape
    c_out2 = params['w2'].shape[0]

    cp_in = _round_up(c_in, _LANES)
    cp_1 = _round_up(c_out1, _LANES)
    cp_2 = _round_up(c_out2, _LANES)

    l_out1 = L + 2 * padding - (K - 1)
    l_out2 = l_out1 + 2 * padding - (K - 1)
    lp1 = L + 2 * padding

    vmem_limit, tile_budget = _vmem_config()
    c_max = max(cp_in, cp_1, cp_2)
    n_tile = _pick_batch_tile(N, (l_out1, l_out2), K, c_max, tile_budget,
                              max_batch_tile)
    G = N // n_tile
    mosaic_params = pltpu.CompilerParams(
        dimension_semantics=("parallel",),       # no revisited blocks -> v7x megacore
        vmem_limit_bytes=vmem_limit)

    # NCL -> NLC, pad length halo + channels to lane-dense 128, cast to bf16
    # (it is the MXU LHS operand; also halves the HBM read of the input slab).
    x_nlc = jnp.transpose(x_ncl, (0, 2, 1))
    xp = jnp.pad(x_nlc, ((0, 0), (padding, padding), (0, cp_in - c_in)))
    xp = xp.astype(jnp.bfloat16)

    w1 = _pad_weight(params['w1'], cp_in, cp_1)
    w2 = _pad_weight(params['w2'], cp_1, cp_2)
    g1, bt1 = _pad_vec(params['g1'], cp_1), _pad_vec(params['beta1'], cp_1)
    g2, bt2 = _pad_vec(params['g2'], cp_2), _pad_vec(params['beta2'], cp_2)
    # Conv biases are NOT passed to the kernels: a per-channel constant added before
    # training-mode BatchNorm cancels exactly, so dropping it preserves the output.

    # ---- Pass A: conv1 + per-tile BN1 partial stats ------------------------------
    # TODO(synk): if profiling shows exposed DMA with bf16 operands (most likely on
    # v6e), set pipeline_mode=pl.Buffered(3) on the xp BlockSpec and sweep 2-3.
    conv1, stats1_p = pl.pallas_call(
        _make_conv_stats_kernel(),
        grid=(G,),
        in_specs=[
            pl.BlockSpec((n_tile, lp1, cp_in), lambda i: (i, 0, 0)),
            pl.BlockSpec((K, cp_in, cp_1), lambda i: (0, 0, 0)),
        ],
        out_specs=(
            pl.BlockSpec((n_tile, l_out1, cp_1), lambda i: (i, 0, 0)),
            pl.BlockSpec((1, 8, cp_1), lambda i: (i, 0, 0)),
        ),
        out_shape=(
            jax.ShapeDtypeStruct((N, l_out1, cp_1), jnp.bfloat16),
            jax.ShapeDtypeStruct((G, 8, cp_1), jnp.float32),
        ),
        compiler_params=mosaic_params,
        cost_estimate=pl.CostEstimate(
            flops=2 * N * l_out1 * K * cp_in * cp_1,
            transcendentals=0,
            bytes_accessed=2 * (N * lp1 * cp_in + K * cp_in * cp_1
                                + N * l_out1 * cp_1) + 4 * G * 8 * cp_1),
    )(xp, w1)
    stats1 = jnp.sum(stats1_p, axis=0)           # tiny (8, Cp1) wrapper reduction

    # ---- Pass B: BN1 + ReLU + conv2 + per-tile BN2 partial stats (fused) ---------
    conv2, stats2_p = pl.pallas_call(
        _make_bn_relu_conv_stats_kernel(padding, N * l_out1),
        grid=(G,),
        in_specs=[
            pl.BlockSpec((n_tile, l_out1, cp_1), lambda i: (i, 0, 0)),
            pl.BlockSpec((8, cp_1), lambda i: (0, 0)),
            pl.BlockSpec((1, cp_1), lambda i: (0, 0)),
            pl.BlockSpec((1, cp_1), lambda i: (0, 0)),
            pl.BlockSpec((K, cp_1, cp_2), lambda i: (0, 0, 0)),
        ],
        out_specs=(
            pl.BlockSpec((n_tile, l_out2, cp_2), lambda i: (i, 0, 0)),
            pl.BlockSpec((1, 8, cp_2), lambda i: (i, 0, 0)),
        ),
        out_shape=(
            jax.ShapeDtypeStruct((N, l_out2, cp_2), jnp.bfloat16),
            jax.ShapeDtypeStruct((G, 8, cp_2), jnp.float32),
        ),
        compiler_params=mosaic_params,
        cost_estimate=pl.CostEstimate(
            flops=2 * N * l_out2 * K * cp_1 * cp_2 + 6 * N * l_out1 * cp_1,
            transcendentals=cp_1,
            bytes_accessed=2 * (N * l_out1 * cp_1 + K * cp_1 * cp_2
                                + N * l_out2 * cp_2)
                           + 4 * (8 * cp_1 + 2 * cp_1 + G * 8 * cp_2)),
    )(conv1, stats1, g1, bt1, w2)
    stats2 = jnp.sum(stats2_p, axis=0)

    # ---- Pass C: BN2 + ReLU -------------------------------------------------------
    y = pl.pallas_call(
        _make_bn_relu_kernel(N * l_out2),
        grid=(G,),
        in_specs=[
            pl.BlockSpec((n_tile, l_out2, cp_2), lambda i: (i, 0, 0)),
            pl.BlockSpec((8, cp_2), lambda i: (0, 0)),
            pl.BlockSpec((1, cp_2), lambda i: (0, 0)),
            pl.BlockSpec((1, cp_2), lambda i: (0, 0)),
        ],
        out_specs=pl.BlockSpec((n_tile, l_out2, cp_2), lambda i: (i, 0, 0)),
        out_shape=jax.ShapeDtypeStruct((N, l_out2, cp_2), jnp.float32),
        compiler_params=mosaic_params,
    )(conv2, stats2, g2, bt2)

    # Drop channel padding, NLC -> NCL.
    # TODO(synk): the final (L,C)->(C,L) transpose could be fused into the last
    # kernel (XLU) to save this wrapper pass once the kernels are near roofline.
    return jnp.transpose(y[:, :, :c_out2], (0, 2, 1))


# --------------------------------------------------------------------------- #
# Parameters + pure-JAX f32 reference (literal PyTorch semantics)
# --------------------------------------------------------------------------- #
def init_params(key, in_channels, out_channels, kernel_size=3):
    k1, k2, k3, k4 = jax.random.split(key, 4)
    s1 = 1.0 / np.sqrt(in_channels * kernel_size)
    s2 = 1.0 / np.sqrt(out_channels * kernel_size)
    return {
        'w1': jax.random.uniform(k1, (out_channels, in_channels, kernel_size),
                                 jnp.float32, -s1, s1),
        'b1': jax.random.uniform(k2, (out_channels,), jnp.float32, -s1, s1),
        'g1': jnp.ones((out_channels,), jnp.float32),
        'beta1': jnp.zeros((out_channels,), jnp.float32),
        'w2': jax.random.uniform(k3, (out_channels, out_channels, kernel_size),
                                 jnp.float32, -s2, s2),
        'b2': jax.random.uniform(k4, (out_channels,), jnp.float32, -s2, s2),
        'g2': jnp.ones((out_channels,), jnp.float32),
        'beta2': jnp.zeros((out_channels,), jnp.float32),
    }


def _ref_stage(x_nlc, w, b, gamma, beta, padding):
    N, L, _ = x_nlc.shape
    Cout, _, K = w.shape
    L_out = L + 2 * padding - (K - 1)
    xp = jnp.pad(x_nlc, ((0, 0), (padding, padding), (0, 0)))
    acc = jnp.zeros((N, L_out, Cout), jnp.float32) + b.reshape(1, 1, Cout)
    for k in range(K):
        acc = acc + jnp.einsum('nli,oi->nlo', xp[:, k:k + L_out, :], w[:, :, k],
                               precision=jax.lax.Precision.HIGHEST)
    mean = jnp.mean(acc, axis=(0, 1), keepdims=True)
    var = jnp.mean((acc - mean) ** 2, axis=(0, 1), keepdims=True)
    y = (acc - mean) * jax.lax.rsqrt(var + EPS)
    y = y * gamma.reshape(1, 1, Cout) + beta.reshape(1, 1, Cout)
    return jnp.maximum(y, 0.0)


def conv_block_reference(x_ncl, params, padding=1):
    x = jnp.transpose(x_ncl, (0, 2, 1))
    x = _ref_stage(x, params['w1'], params['b1'], params['g1'], params['beta1'], padding)
    x = _ref_stage(x, params['w2'], params['b2'], params['g2'], params['beta2'], padding)
    return jnp.transpose(x, (0, 2, 1))


# --------------------------------------------------------------------------- #
if __name__ == "__main__":
    key = jax.random.PRNGKey(0)
    k_x, k_p = jax.random.split(key)

    batch, in_channels, out_channels, length = 2, 4, 8, 16
    x = jax.random.normal(k_x, (batch, in_channels, length), jnp.float32)  # NCL
    params = init_params(k_p, in_channels, out_channels, kernel_size=3)

    ref = conv_block_reference(x, params, padding=1)

    # Default tiling (largest batch tile that fits the per-generation VMEM budget).
    out = jax.block_until_ready(conv_block_forward(x, params, padding=1))
    assert out.shape == (batch, out_channels, length), out.shape
    # Tolerance reflects bf16 MXU operands / bf16 inter-pass activations vs an f32
    # reference; the structure (conv -> training-mode BN -> ReLU, twice) is exact.
    np.testing.assert_allclose(np.asarray(out), np.asarray(ref), rtol=5e-2, atol=5e-2)

    # Force a multi-step grid (batch tile = 1) to exercise the per-tile partial
    # BN-statistics path and the pipelined conv passes across grid steps.
    out2 = jax.block_until_ready(
        conv_block_forward(x, params, padding=1, max_batch_tile=1))
    np.testing.assert_allclose(np.asarray(out2), np.asarray(ref), rtol=5e-2, atol=5e-2)

    print("KERNEL_OK")
</pallas_src>

<mosaic_0001>
module attributes {stable_mosaic.version = 11 : i64} {
  func.func @kernel(%arg0: i32, %arg1: memref<2x18x128xbf16, #tpu.memory_space<vmem>>, %arg2: memref<3x128x128xbf16, #tpu.memory_space<vmem>>, %arg3: memref<2x16x128xbf16, #tpu.memory_space<vmem>>, %arg4: memref<1x8x128xf32, #tpu.memory_space<vmem>>) attributes {dimension_semantics = [#tpu.dimension_semantics<parallel>], iteration_bounds = array<i64: 1>, scalar_prefetch = 0 : i64, scratch_operands = 0 : i64, tpu.core_type = #tpu.core_type<tc>, window_params = [{transform_indices = @transform_0, window_bounds = array<i64: 2, 18, 128>}, {pipeline_mode = #tpu.pipeline_mode<synchronous>, transform_indices = @transform_1, window_bounds = array<i64: 3, 128, 128>}, {transform_indices = @transform_2, window_bounds = array<i64: 2, 16, 128>}, {transform_indices = @transform_3, window_bounds = array<i64: 1, 8, 128>}]} {
    %cst = arith.constant 0.000000e+00 : f32
    %0 = vector.broadcast %cst : f32 to vector<32x128xf32>
    %c0 = arith.constant 0 : index
    %c0_0 = arith.constant 0 : index
    %c0_1 = arith.constant 0 : index
    %1 = vector.load %arg1[%c0, %c0_0, %c0_1] : memref<2x18x128xbf16, #tpu.memory_space<vmem>>, vector<2x16x128xbf16>
    %2 = vector.shape_cast %1 : vector<2x16x128xbf16> to vector<32x128xbf16>
    %c0_2 = arith.constant 0 : index
    %c0_3 = arith.constant 0 : index
    %c0_4 = arith.constant 0 : index
    %3 = vector.load %arg2[%c0_2, %c0_3, %c0_4] : memref<3x128x128xbf16, #tpu.memory_space<vmem>>, vector<1x128x128xbf16>
    %4 = vector.shape_cast %3 : vector<1x128x128xbf16> to vector<128x128xbf16>
    %cst_5 = arith.constant dense<0.000000e+00> : vector<32x128xf32>
    %5 = tpu.matmul %2, %4, %cst_5 {dimension_numbers = #tpu.dot_dimension_numbers<[1], [0], [0], [1], [0, 0, 1, 1], [], []>} : vector<32x128xbf16>, vector<128x128xbf16>, vector<32x128xf32> -> vector<32x128xf32>
    %6 = arith.addf %0, %5 : vector<32x128xf32>
    %c0_6 = arith.constant 0 : index
    %c1 = arith.constant 1 : index
    %c0_7 = arith.constant 0 : index
    %7 = vector.load %arg1[%c0_6, %c1, %c0_7] : memref<2x18x128xbf16, #tpu.memory_space<vmem>>, vector<2x16x128xbf16>
    %8 = vector.shape_cast %7 : vector<2x16x128xbf16> to vector<32x128xbf16>
    %c1_8 = arith.constant 1 : index
    %c0_9 = arith.constant 0 : index
    %c0_10 = arith.constant 0 : index
    %9 = vector.load %arg2[%c1_8, %c0_9, %c0_10] : memref<3x128x128xbf16, #tpu.memory_space<vmem>>, vector<1x128x128xbf16>
    %10 = vector.shape_cast %9 : vector<1x128x128xbf16> to vector<128x128xbf16>
    %cst_11 = arith.constant dense<0.000000e+00> : vector<32x128xf32>
    %11 = tpu.matmul %8, %10, %cst_11 {dimension_numbers = #tpu.dot_dimension_numbers<[1], [0], [0], [1], [0, 0, 1, 1], [], []>} : vector<32x128xbf16>, vector<128x128xbf16>, vector<32x128xf32> -> vector<32x128xf32>
    %12 = arith.addf %6, %11 : vector<32x128xf32>
    %c0_12 = arith.constant 0 : index
    %c2 = arith.constant 2 : index
    %c0_13 = arith.constant 0 : index
    %13 = vector.load %arg1[%c0_12, %c2, %c0_13] : memref<2x18x128xbf16, #tpu.memory_space<vmem>>, vector<2x16x128xbf16>
    %14 = vector.shape_cast %13 : vector<2x16x128xbf16> to vector<32x128xbf16>
    %c2_14 = arith.constant 2 : index
    %c0_15 = arith.constant 0 : index
    %c0_16 = arith.constant 0 : index
    %15 = vector.load %arg2[%c2_14, %c0_15, %c0_16] : memref<3x128x128xbf16, #tpu.memory_space<vmem>>, vector<1x128x128xbf16>
    %16 = vector.shape_cast %15 : vector<1x128x128xbf16> to vector<128x128xbf16>
    %cst_17 = arith.constant dense<0.000000e+00> : vector<32x128xf32>
    %17 = tpu.matmul %14, %16, %cst_17 {dimension_numbers = #tpu.dot_dimension_numbers<[1], [0], [0], [1], [0, 0, 1, 1], [], []>} : vector<32x128xbf16>, vector<128x128xbf16>, vector<32x128xf32> -> vector<32x128xf32>
    %18 = arith.addf %12, %17 : vector<32x128xf32>
    %cst_18 = arith.constant dense<0.000000e+00> : vector<128xf32>
    %19 = vector.multi_reduction <add>, %18, %cst_18 [0] : vector<32x128xf32> to vector<128xf32>
    %20 = vector.shape_cast %19 : vector<128xf32> to vector<1x128xf32>
    %21 = arith.mulf %18, %18 : vector<32x128xf32>
    %cst_19 = arith.constant dense<0.000000e+00> : vector<128xf32>
    %22 = vector.multi_reduction <add>, %21, %cst_19 [0] : vector<32x128xf32> to vector<128xf32>
    %23 = vector.shape_cast %22 : vector<128xf32> to vector<1x128xf32>
    %cst_20 = arith.constant 0.000000e+00 : f32
    %24 = vector.broadcast %cst_20 : f32 to vector<6x128xf32>
    %25 = tpu.concatenate %20, %23, %24 in 0 : vector<1x128xf32>, vector<1x128xf32>, vector<6x128xf32> -> vector<8x128xf32>
    %26 = vector.shape_cast %25 : vector<8x128xf32> to vector<1x8x128xf32>
    %c0_21 = arith.constant 0 : index
    %c0_22 = arith.constant 0 : index
    %c0_23 = arith.constant 0 : index
    %27 = vector.load %arg4[%c0_21, %c0_22, %c0_23] : memref<1x8x128xf32, #tpu.memory_space<vmem>>, vector<1x8x128xf32>
    tpu.vector_store %arg4[%c0_21, %c0_22, %c0_23], %26 {strides = array<i32>} : memref<1x8x128xf32, #tpu.memory_space<vmem>>, vector<1x8x128xf32>,
    %28 = vector.shape_cast %18 : vector<32x128xf32> to vector<2x16x128xf32>
    %29 = arith.truncf %28 : vector<2x16x128xf32> to vector<2x16x128xbf16>
    %c0_24 = arith.constant 0 : index
    %c0_25 = arith.constant 0 : index
    %c0_26 = arith.constant 0 : index
    %30 = vector.load %arg3[%c0_24, %c0_25, %c0_26] : memref<2x16x128xbf16, #tpu.memory_space<vmem>>, vector<2x16x128xbf16>
    tpu.vector_store %arg3[%c0_24, %c0_25, %c0_26], %29 {strides = array<i32>} : memref<2x16x128xbf16, #tpu.memory_space<vmem>>, vector<2x16x128xbf16>,
    return
  }
  func.func @transform_0(%arg0: i32) -> (i32, i32, i32) {
    %c0_i32 = arith.constant 0 : i32
    %c0_i32_0 = arith.constant 0 : i32
    %c0_i32_1 = arith.constant 0 : i32
    return %arg0, %c0_i32, %c0_i32_0 : i32, i32, i32
  }
  func.func @transform_1(%arg0: i32) -> (i32, i32, i32) {
    %c0_i32 = arith.constant 0 : i32
    %c0_i32_0 = arith.constant 0 : i32
    %c0_i32_1 = arith.constant 0 : i32
    %c0_i32_2 = arith.constant 0 : i32
    return %c0_i32, %c0_i32_0, %c0_i32_1 : i32, i32, i32
  }
  func.func @transform_2(%arg0: i32) -> (i32, i32, i32) {
    %c0_i32 = arith.constant 0 : i32
    %c0_i32_0 = arith.constant 0 : i32
    %c0_i32_1 = arith.constant 0 : i32
    return %arg0, %c0_i32, %c0_i32_0 : i32, i32, i32
  }
  func.func @transform_3(%arg0: i32) -> (i32, i32, i32) {
    %c0_i32 = arith.constant 0 : i32
    %c0_i32_0 = arith.constant 0 : i32
    %c0_i32_1 = arith.constant 0 : i32
    return %arg0, %c0_i32, %c0_i32_0 : i32, i32, i32
  }
}

</mosaic_0001>

<llo_original>
// kernel: tpu_custom_call.1
$region0: #{tpu_custom_call.1}
  #allocation0 [shape = 'u32[]', space=smem, size = 0x4, offset = 0x4, fixed_abs, tag = 'smem constant byte address 0x4 - core index']
  #allocation1 [shape = 'u32[144,128]{1,0:T(1,128)}', space=vmem, size = 0x12000, scoped, tag = 'internal scratch']
  %s0 = inlined_call_operand.vmem [shape: bf16[2,18,128], index: 0, kind: input, shape index: {}]
  %s1 = inlined_call_operand.hbm [shape: bf16[3,128,128], index: 1, kind: input, shape index: {}]
  %s2 = inlined_call_operand.hbm [shape: bf16[2,16,128], index: 2, kind: output, shape index: {0}]
  %s3 = inlined_call_operand.hbm [shape: f32[1,8,128], index: 3, kind: output, shape index: {1}]
  %4 = xla_tuple %s2, %s3
  %s5 = sld [smem:[#allocation0]]
  $region30: #{tpu_custom_call.1} parent=0
    _
  %s7 = ssub.s32 1, %s5
  %s8 = scalar_select 0, %s7, %s5
  $region1: #{tpu_custom_call.1} parent=0
    #allocation2 [shape = 'u8[98304]{0}', space=vmem, size = 0x18000, scoped, tag = 'input window, operand 1, single buffered']
    #allocation3 [shape = 's32[1]{0}', space=sflag, size = 0x4, scoped, tag = 'scoped memory for tpu_custom_call.1']
    #allocation4 [shape = 's32[1]{0}', space=sflag, size = 0x4, scoped, tag = 'scoped memory for tpu_custom_call.1']
    #allocation5 [shape = 'u8[8192]{0}', space=vmem, size = 0x2000, scoped, tag = 'output window, operand 0, single buffered']
    #allocation6 [shape = 'u8[4096]{0}', space=vmem, size = 0x1000, scoped, tag = 'output window, operand 1, single buffered']
    #allocation7 [shape = 's32[1]{0}', space=sflag, size = 0x4, scoped, tag = 'scoped memory for tpu_custom_call.1']
    %9 = vsyncpa [#allocation3], 0
    %10 = vsyncpa [#allocation4], 0
    %11 = vsyncpa [#allocation7], 0
    // Predicated region
    $region2: #{tpu_custom_call.1} parent=1 // pred_check
      _
    $region3: #{tpu_custom_call.1} parent=1 // pred_check_branch
      %13 = sbr.rel (0) target = $region5
    $region4: #{tpu_custom_call.1} parent=1 // pred_region
      _
    $region5: #{tpu_custom_call.1} parent=1 // pred_fallthru
      _
    // Predicated region
    $region6: #{tpu_custom_call.1} parent=1 // pred_check
      _
    $region7: #{tpu_custom_call.1} parent=1 // pred_check_branch
      %15 = sbr.rel (0) target = $region9
    $region8: #{tpu_custom_call.1} parent=1 // pred_region
      %s17 = ssub.s32 3072, 3072
      %18 = vsyncadd [#allocation3], %s17
      %s19 = sshll.u32 [#allocation2], 4
      %s20 = int_to_ptr.vmem [resolvable:$true] %s19
      %25 = dma.hbm_to_vmem [thread:$0]  %s1, 3072, %s20, [#allocation3], 64, 64, 4
    $region9: #{tpu_custom_call.1} parent=1 // pred_fallthru
      _
    // Predicated region
    $region10: #{tpu_custom_call.1} parent=1 // pred_check
      _
    $region11: #{tpu_custom_call.1} parent=1 // pred_check_branch
      %27 = sbr.rel (0) target = $region13
    $region12: #{tpu_custom_call.1} parent=1 // pred_region
      %28 = dma.done [#allocation3], 3072
    $region13: #{tpu_custom_call.1} parent=1 // pred_fallthru
      _
    %v30 = vld [vmem:[%s0] sm:$0xf]
    %v31 = vld [vmem:[%s0 + $0x4] sm:$0xf]
    %v32 = vld [vmem:[%s0 + $0xc] sm:$0xf]
    %v33 = vld [vmem:[%s0 + $0x10] sm:$0xf]
    %v34 = vld [vmem:[#allocation2] sm:$0xf]
    %v35 = vld [vmem:[#allocation2 + $0x4] sm:$0xf]
    %v36 = vld [vmem:[#allocation2 + $0x8] sm:$0xf]
    %v37 = vld [vmem:[#allocation2 + $0xc] sm:$0xf]
    %v38 = vld [vmem:[#allocation2 + $0x10] sm:$0xf]
    %v39 = vld [vmem:[#allocation2 + $0x14] sm:$0xf]
    %v40 = vld [vmem:[#allocation2 + $0x18] sm:$0xf]
    %v41 = vld [vmem:[#allocation2 + $0x1c] sm:$0xf]
    %v42 = vld [vmem:[#allocation2 + $0x20] sm:$0xf]
    %v43 = vld [vmem:[#allocation2 + $0x24] sm:$0xf]
    %v44 = vld [vmem:[#allocation2 + $0x28] sm:$0xf]
    %v45 = vld [vmem:[#allocation2 + $0x2c] sm:$0xf]
    %v46 = vld [vmem:[#allocation2 + $0x30] sm:$0xf]
    %v47 = vld [vmem:[#allocation2 + $0x34] sm:$0xf]
    %v48 = vld [vmem:[#allocation2 + $0x38] sm:$0xf]
    %v49 = vld [vmem:[#allocation2 + $0x3c] sm:$0xf]
    %v50 = vld [vmem:[%s0 + $0x8] sm:$0x1]
    %v51 = vld [vmem:[%s0 + $0x14] sm:$0x1]
    %vm52 = vsmask.f32 3328
    %vm53 = vsmask.f32 7440
    %vm54 = vmor %vm52, %vm53
    %v56 = vshrl.u32 %v30, 16
    %v58 = vrot.slane %v56, 4
    %v59 = vshll.u32 %v30, 16
    %v61 = vrot.slane %v59, 5
    %v62 = vor.u32 %v58, %v61
    %v63 = vrot.slane %v62, 4
    %v65 = vshll.u32 %v31, 16
    %v67 = vrot.slane %v65, 5
    %v68 = vsel %vm54, %v63, %v67
    %v69 = vshrl.u32 %v31, 16
    %v71 = vrot.slane %v69, 4
    %v72 = vor.u32 %v71, %v67
    %v73 = vrot.slane %v72, 4
    %v75 = vshll.u32 %v50, 16
    %v77 = vrot.slane %v75, 5
    %v78 = vsel %vm54, %v73, %v77
    %v80 = vshrl.u32 %v32, 16
    %v82 = vrot.slane %v80, 4
    %v83 = vshll.u32 %v32, 16
    %v85 = vrot.slane %v83, 5
    %v86 = vor.u32 %v82, %v85
    %v87 = vrot.slane %v86, 4
    %v89 = vshll.u32 %v33, 16
    %v91 = vrot.slane %v89, 5
    %v92 = vsel %vm54, %v87, %v91
    %v93 = vshrl.u32 %v33, 16
    %v95 = vrot.slane %v93, 4
    %v96 = vor.u32 %v95, %v91
    %v97 = vrot.slane %v96, 4
    %v99 = vshll.u32 %v51, 16
    %v101 = vrot.slane %v99, 5
    %v102 = vsel %vm54, %v97, %v101
    %s103 = scalar_lea.vmem [#allocation2], 64
    %v104 = vld [vmem:[%s103] sm:$0xf]
    %v105 = vld [vmem:[%s103 + $0x4] sm:$0xf]
    %v106 = vld [vmem:[%s103 + $0x8] sm:$0xf]
    %v107 = vld [vmem:[%s103 + $0xc] sm:$0xf]
    %v108 = vld [vmem:[%s103 + $0x10] sm:$0xf]
    %v109 = vld [vmem:[%s103 + $0x14] sm:$0xf]
    %v110 = vld [vmem:[%s103 + $0x18] sm:$0xf]
    %v111 = vld [vmem:[%s103 + $0x1c] sm:$0xf]
    %v112 = vld [vmem:[%s103 + $0x20] sm:$0xf]
    %v113 = vld [vmem:[%s103 + $0x24] sm:$0xf]
    %v114 = vld [vmem:[%s103 + $0x28] sm:$0xf]
    %v115 = vld [vmem:[%s103 + $0x2c] sm:$0xf]
    %v116 = vld [vmem:[%s103 + $0x30] sm:$0xf]
    %v117 = vld [vmem:[%s103 + $0x34] sm:$0xf]
    %v118 = vld [vmem:[%s103 + $0x38] sm:$0xf]
    %v119 = vld [vmem:[%s103 + $0x3c] sm:$0xf]
    %v120 = vunpack.c.l.b16 %v68
    %v121 = vunpack.c.l.b16 %v78
    %v122 = vunpack.c.l.b16 %v92
    %v123 = vunpack.c.l.b16 %v102
    %v124 = vpack.c.b16 %v121, %v120
    %v125 = vpack.c.b16 %v123, %v122
    %v144 = vunpack.c.l.b16 %v104
    %v145 = vunpack.c.l.b16 %v105
    %v146 = vunpack.c.l.b16 %v106
    %v147 = vunpack.c.l.b16 %v107
    %v148 = vunpack.c.l.b16 %v108
    %v149 = vunpack.c.l.b16 %v109
    %v150 = vunpack.c.l.b16 %v110
    %v151 = vunpack.c.l.b16 %v111
    %v152 = vunpack.c.l.b16 %v112
    %v153 = vunpack.c.l.b16 %v113
    %v154 = vunpack.c.l.b16 %v114
    %v155 = vunpack.c.l.b16 %v115
    %v156 = vunpack.c.l.b16 %v116
    %v157 = vunpack.c.l.b16 %v117
    %v158 = vunpack.c.l.b16 %v118
    %v159 = vunpack.c.l.b16 %v119
    %v160 = vpack.c.b16 %v145, %v144
    %v161 = vpack.c.b16 %v147, %v146
    %v162 = vpack.c.b16 %v149, %v148
    %v163 = vpack.c.b16 %v151, %v150
    %v164 = vpack.c.b16 %v153, %v152
    %v165 = vpack.c.b16 %v155, %v154
    %v166 = vpack.c.b16 %v157, %v156
    %v167 = vpack.c.b16 %v159, %v158
    %176 = vmatprep.subr.bf16.mxu0 0
    %177 = vmatpush1.bf16.msra.mxu0 %v160
    %178 = vmatprep.subr.bf16.mxu0 0
    %179 = vmatpush1.bf16.msra.mxu0 %v161
    %180 = vmatprep.subr.bf16.mxu0 0
    %181 = vmatpush1.bf16.msra.mxu0 %v162
    %182 = vmatprep.subr.bf16.mxu0 0
    %183 = vmatpush1.bf16.msra.mxu0 %v163
    %184 = vmatprep.subr.bf16.mxu0 0
    %185 = vmatpush1.bf16.msra.mxu0 %v164
    %186 = vmatprep.subr.bf16.mxu0 0
    %187 = vmatpush1.bf16.msra.mxu0 %v165
    %188 = vmatprep.subr.bf16.mxu0 0
    %189 = vmatpush1.bf16.msra.mxu0 %v166
    %190 = vmatprep.subr.bf16.mxu0 0
    %191 = vmatpush1.bf16.msra.mxu0 %v167
    %192 = vmatprep.subr.bf16.mxu0 0
    %193 = vmatpush1.bf16.msra.mxu0 0
    %194 = vmatprep.subr.bf16.mxu0 0
    %195 = vmatpush1.bf16.msra.mxu0 0
    %196 = vmatprep.subr.bf16.mxu0 0
    %197 = vmatpush1.bf16.msra.mxu0 0
    %198 = vmatprep.subr.bf16.mxu0 0
    %199 = vmatpush1.bf16.msra.mxu0 0
    %200 = vmatprep.subr.bf16.mxu0 0
    %201 = vmatpush1.bf16.msra.mxu0 0
    %202 = vmatprep.subr.bf16.mxu0 0
    %203 = vmatpush1.bf16.msra.mxu0 0
    %204 = vmatprep.subr.bf16.mxu0 0
    %205 = vmatpush1.bf16.msra.mxu0 0
    %206 = vmatprep.subr.bf16.mxu0 0
    %207 = vmatpush1.bf16.msra.mxu0 0
    %208 = vmatprep.mubr.bf16.mxu0 0
    %209 = vmatmul.mubr.bf16.gmra.mrb[0].mxu0 %v124
    %v210 = vpop.f32.mrb[0].mxu0
    %v211 = vadd.f32 0.0, %v210
    %v212 = vpop.f32.mrb[0].mxu0
    %v213 = vpop.f32.mrb[0].mxu0
    %v214 = vadd.f32 0.0, %v213
    %v215 = vpop.f32.mrb[0].mxu0
    %216 = vmatprep.mubr.bf16.mxu0 0
    %217 = vmatmul.mubr.bf16.gmra.mrb[0].mxu0 %v125
    %v218 = vpop.f32.mrb[0].mxu0
    %v219 = vadd.f32 0.0, %v218
    %v220 = vpop.f32.mrb[0].mxu0
    %v221 = vpop.f32.mrb[0].mxu0
    %v222 = vadd.f32 0.0, %v221
    %v223 = vpop.f32.mrb[0].mxu0
    %224 = vdwg.mxu0
    %v229 = vunpack.c.l.b16 %v30
    %v230 = vunpack.c.l.b16 %v31
    %v231 = vunpack.c.l.b16 %v32
    %v232 = vunpack.c.l.b16 %v33
    %v233 = vpack.c.b16 %v230, %v229
    %v234 = vpack.c.b16 %v232, %v231
    %v253 = vunpack.c.l.b16 %v34
    %v254 = vunpack.c.l.b16 %v35
    %v255 = vunpack.c.l.b16 %v36
    %v256 = vunpack.c.l.b16 %v37
    %v257 = vunpack.c.l.b16 %v38
    %v258 = vunpack.c.l.b16 %v39
    %v259 = vunpack.c.l.b16 %v40
    %v260 = vunpack.c.l.b16 %v41
    %v261 = vunpack.c.l.b16 %v42
    %v262 = vunpack.c.l.b16 %v43
    %v263 = vunpack.c.l.b16 %v44
    %v264 = vunpack.c.l.b16 %v45
    %v265 = vunpack.c.l.b16 %v46
    %v266 = vunpack.c.l.b16 %v47
    %v267 = vunpack.c.l.b16 %v48
    %v268 = vunpack.c.l.b16 %v49
    %v269 = vpack.c.b16 %v254, %v253
    %v270 = vpack.c.b16 %v256, %v255
    %v271 = vpack.c.b16 %v258, %v257
    %v272 = vpack.c.b16 %v260, %v259
    %v273 = vpack.c.b16 %v262, %v261
    %v274 = vpack.c.b16 %v264, %v263
    %v275 = vpack.c.b16 %v266, %v265
    %v276 = vpack.c.b16 %v268, %v267
    %285 = vmatprep.subr.bf16.mxu0 0
    %286 = vmatpush1.bf16.msra.mxu0 %v269
    %287 = vmatprep.subr.bf16.mxu0 0
    %288 = vmatpush1.bf16.msra.mxu0 %v270
    %289 = vmatprep.subr.bf16.mxu0 0
    %290 = vmatpush1.bf16.msra.mxu0 %v271
    %291 = vmatprep.subr.bf16.mxu0 0
    %292 = vmatpush1.bf16.msra.mxu0 %v272
    %293 = vmatprep.subr.bf16.mxu0 0
    %294 = vmatpush1.bf16.msra.mxu0 %v273
    %295 = vmatprep.subr.bf16.mxu0 0
    %296 = vmatpush1.bf16.msra.mxu0 %v274
    %297 = vmatprep.subr.bf16.mxu0 0
    %298 = vmatpush1.bf16.msra.mxu0 %v275
    %299 = vmatprep.subr.bf16.mxu0 0
    %300 = vmatpush1.bf16.msra.mxu0 %v276
    %301 = vmatprep.subr.bf16.mxu0 0
    %302 = vmatpush1.bf16.msra.mxu0 0
    %303 = vmatprep.subr.bf16.mxu0 0
    %304 = vmatpush1.bf16.msra.mxu0 0
    %305 = vmatprep.subr.bf16.mxu0 0
    %306 = vmatpush1.bf16.msra.mxu0 0
    %307 = vmatprep.subr.bf16.mxu0 0
    %308 = vmatpush1.bf16.msra.mxu0 0
    %309 = vmatprep.subr.bf16.mxu0 0
    %310 = vmatpush1.bf16.msra.mxu0 0
    %311 = vmatprep.subr.bf16.mxu0 0
    %312 = vmatpush1.bf16.msra.mxu0 0
    %313 = vmatprep.subr.bf16.mxu0 0
    %314 = vmatpush1.bf16.msra.mxu0 0
    %315 = vmatprep.subr.bf16.mxu0 0
    %316 = vmatpush1.bf16.msra.mxu0 0
    %317 = vmatprep.mubr.bf16.mxu0 0
    %318 = vmatmul.mubr.bf16.gmra.mrb[0].mxu0 %v233
    %v319 = vpop.f32.mrb[0].mxu0
    %v320 = vadd.f32 %v211, %v319
    %v321 = vpop.f32.mrb[0].mxu0
    %v322 = vpop.f32.mrb[0].mxu0
    %v323 = vadd.f32 %v214, %v322
    %v324 = vpop.f32.mrb[0].mxu0
    %325 = vmatprep.mubr.bf16.mxu0 0
    %326 = vmatmul.mubr.bf16.gmra.mrb[0].mxu0 %v234
    %v327 = vpop.f32.mrb[0].mxu0
    %v328 = vadd.f32 %v219, %v327
    %v329 = vpop.f32.mrb[0].mxu0
    %v330 = vpop.f32.mrb[0].mxu0
    %v331 = vadd.f32 %v222, %v330
    %v332 = vpop.f32.mrb[0].mxu0
    %333 = vdwg.mxu0
    %v334 = vld [vmem:[%s0] sm:$0xe]
    %v335 = vld [vmem:[%s0 + $0xc] sm:$0xe]
    %vm340 = vcmask 1042432
    %vm341 = vcmask 1046532
    %vm342 = vmor %vm340, %vm341
    %v343 = vrot.slane %v334, 5
    %v344 = vrot.slane %v343, 4
    %v345 = vrot.slane %v31, 5
    %v346 = vsel %vm342, %v344, %v345
    %v347 = vrot.slane %v345, 4
    %v348 = vrot.slane %v50, 5
    %v349 = vsel %vm342, %v347, %v348
    %v350 = vrot.slane %v335, 5
    %v351 = vrot.slane %v350, 4
    %v352 = vrot.slane %v33, 5
    %v353 = vsel %vm342, %v351, %v352
    %v354 = vrot.slane %v352, 4
    %v355 = vrot.slane %v51, 5
    %v356 = vsel %vm342, %v354, %v355
    %s357 = scalar_lea.vmem [#allocation2], 128
    %v358 = vld [vmem:[%s357] sm:$0xf]
    %v359 = vld [vmem:[%s357 + $0x4] sm:$0xf]
    %v360 = vld [vmem:[%s357 + $0x8] sm:$0xf]
    %v361 = vld [vmem:[%s357 + $0xc] sm:$0xf]
    %v362 = vld [vmem:[%s357 + $0x10] sm:$0xf]
    %v363 = vld [vmem:[%s357 + $0x14] sm:$0xf]
    %v364 = vld [vmem:[%s357 + $0x18] sm:$0xf]
    %v365 = vld [vmem:[%s357 + $0x1c] sm:$0xf]
    %v366 = vld [vmem:[%s357 + $0x20] sm:$0xf]
    %v367 = vld [vmem:[%s357 + $0x24] sm:$0xf]
    %v368 = vld [vmem:[%s357 + $0x28] sm:$0xf]
    %v369 = vld [vmem:[%s357 + $0x2c] sm:$0xf]
    %v370 = vld [vmem:[%s357 + $0x30] sm:$0xf]
    %v371 = vld [vmem:[%s357 + $0x34] sm:$0xf]
    %v372 = vld [vmem:[%s357 + $0x38] sm:$0xf]
    %v373 = vld [vmem:[%s357 + $0x3c] sm:$0xf]
    %v374 = vunpack.c.l.b16 %v346
    %v375 = vunpack.c.l.b16 %v349
    %v376 = vunpack.c.l.b16 %v353
    %v377 = vunpack.c.l.b16 %v356
    %v378 = vpack.c.b16 %v375, %v374
    %v379 = vpack.c.b16 %v377, %v376
    %v398 = vunpack.c.l.b16 %v358
    %v399 = vunpack.c.l.b16 %v359
    %v400 = vunpack.c.l.b16 %v360
    %v401 = vunpack.c.l.b16 %v361
    %v402 = vunpack.c.l.b16 %v362
    %v403 = vunpack.c.l.b16 %v363
    %v404 = vunpack.c.l.b16 %v364
    %v405 = vunpack.c.l.b16 %v365
    %v406 = vunpack.c.l.b16 %v366
    %v407 = vunpack.c.l.b16 %v367
    %v408 = vunpack.c.l.b16 %v368
    %v409 = vunpack.c.l.b16 %v369
    %v410 = vunpack.c.l.b16 %v370
    %v411 = vunpack.c.l.b16 %v371
    %v412 = vunpack.c.l.b16 %v372
    %v413 = vunpack.c.l.b16 %v373
    %v414 = vpack.c.b16 %v399, %v398
    %v415 = vpack.c.b16 %v401, %v400
    %v416 = vpack.c.b16 %v403, %v402
    %v417 = vpack.c.b16 %v405, %v404
    %v418 = vpack.c.b16 %v407, %v406
    %v419 = vpack.c.b16 %v409, %v408
    %v420 = vpack.c.b16 %v411, %v410
    %v421 = vpack.c.b16 %v413, %v412
    %430 = vmatprep.subr.bf16.mxu0 0
    %431 = vmatpush1.bf16.msra.mxu0 %v414
    %432 = vmatprep.subr.bf16.mxu0 0
    %433 = vmatpush1.bf16.msra.mxu0 %v415
    %434 = vmatprep.subr.bf16.mxu0 0
    %435 = vmatpush1.bf16.msra.mxu0 %v416
    %436 = vmatprep.subr.bf16.mxu0 0
    %437 = vmatpush1.bf16.msra.mxu0 %v417
    %438 = vmatprep.subr.bf16.mxu0 0
    %439 = vmatpush1.bf16.msra.mxu0 %v418
    %440 = vmatprep.subr.bf16.mxu0 0
    %441 = vmatpush1.bf16.msra.mxu0 %v419
    %442 = vmatprep.subr.bf16.mxu0 0
    %443 = vmatpush1.bf16.msra.mxu0 %v420
    %444 = vmatprep.subr.bf16.mxu0 0
    %445 = vmatpush1.bf16.msra.mxu0 %v421
    %446 = vmatprep.subr.bf16.mxu0 0
    %447 = vmatpush1.bf16.msra.mxu0 0
    %448 = vmatprep.subr.bf16.mxu0 0
    %449 = vmatpush1.bf16.msra.mxu0 0
    %450 = vmatprep.subr.bf16.mxu0 0
    %451 = vmatpush1.bf16.msra.mxu0 0
    %452 = vmatprep.subr.bf16.mxu0 0
    %453 = vmatpush1.bf16.msra.mxu0 0
    %454 = vmatprep.subr.bf16.mxu0 0
    %455 = vmatpush1.bf16.msra.mxu0 0
    %456 = vmatprep.subr.bf16.mxu0 0
    %457 = vmatpush1.bf16.msra.mxu0 0
    %458 = vmatprep.subr.bf16.mxu0 0
    %459 = vmatpush1.bf16.msra.mxu0 0
    %460 = vmatprep.subr.bf16.mxu0 0
    %461 = vmatpush1.bf16.msra.mxu0 0
    %462 = vmatprep.mubr.bf16.mxu0 0
    %463 = vmatmul.mubr.bf16.gmra.mrb[0].mxu0 %v378
    %v464 = vpop.f32.mrb[0].mxu0
    %v465 = vadd.f32 0.0, %v464
    %v466 = vpop.f32.mrb[0].mxu0
    %v467 = vpop.f32.mrb[0].mxu0
    %v468 = vadd.f32 0.0, %v467
    %v469 = vpop.f32.mrb[0].mxu0
    %470 = vmatprep.mubr.bf16.mxu0 0
    %471 = vmatmul.mubr.bf16.gmra.mrb[0].mxu0 %v379
    %v472 = vpop.f32.mrb[0].mxu0
    %v473 = vadd.f32 0.0, %v472
    %v474 = vpop.f32.mrb[0].mxu0
    %v475 = vpop.f32.mrb[0].mxu0
    %v476 = vadd.f32 0.0, %v475
    %v477 = vpop.f32.mrb[0].mxu0
    %478 = vdwg.mxu0
    %v479 = vadd.f32 %v320, %v465
    %v480 = vadd.f32 %v323, %v468
    %v481 = vadd.f32 %v328, %v473
    %v482 = vadd.f32 %v331, %v476
    %v483 = vadd.f32 %v479, %v480
    %v484 = vadd.f32 %v483, %v481
    %v485 = vadd.f32 %v484, %v482
    %v486 = vrot.slane %v485, 4
    %v487 = vadd.f32 %v485, %v486
    %v488 = vrot.slane %v487, 2
    %v489 = vadd.f32 %v487, %v488
    %v490 = vrot.slane %v489, 1
    %v491 = vadd.f32 %v489, %v490
    %v492 = vmul.f32 %v479, %v479
    %v493 = vmul.f32 %v480, %v480
    %v494 = vmul.f32 %v481, %v481
    %v495 = vmul.f32 %v482, %v482
    %v496 = vadd.f32 %v492, %v493
    %v497 = vadd.f32 %v496, %v494
    %v498 = vadd.f32 %v497, %v495
    %v499 = vrot.slane %v498, 4
    %v500 = vadd.f32 %v498, %v499
    %v501 = vrot.slane %v500, 2
    %v502 = vadd.f32 %v500, %v501
    %v503 = vrot.slane %v502, 1
    %v504 = vadd.f32 %v502, %v503
    %vm505 = vcmask 1040384
    %v506 = vsel %vm505, %v491, %v504
    %vm507 = vcmask 1041408
    %v508 = vsel %vm507, %v506, 0.0
    %509 = vst [vmem:[#allocation6] sm:$0xff] %v508
    %v510 = vpack.c.bf16 %v480, %v479
    %v511 = vpack.c.bf16 %v482, %v481
    %v514 = vunpack.c.l.b16 %v510
    %v515 = vunpack.c.h.b16 %v510
    %v516 = vunpack.c.l.b16 %v511
    %v517 = vunpack.c.h.b16 %v511
    %v518 = vpack.c.b16 %v514, %v514
    %v519 = vpack.c.b16 %v515, %v515
    %v520 = vpack.c.b16 %v516, %v516
    %v521 = vpack.c.b16 %v517, %v517
    %526 = vst [vmem:[#allocation5] sm:$0xf] %v518
    %527 = vst [vmem:[#allocation5 + $0x4] sm:$0xf] %v519
    %528 = vst [vmem:[#allocation5 + $0x8] sm:$0xf] %v520
    %529 = vst [vmem:[#allocation5 + $0xc] sm:$0xf] %v521
    // Predicated region
    $region14: #{tpu_custom_call.1} parent=1 // pred_check
      _
    $region15: #{tpu_custom_call.1} parent=1 // pred_check_branch
      %531 = sbr.rel (0) target = $region17
    $region16: #{tpu_custom_call.1} parent=1 // pred_region
      %s533 = ssub.s32 256, 256
      %534 = vsyncadd [#allocation4], %s533
      %s535 = sshll.u32 [#allocation5], 4
      %s536 = int_to_ptr.vmem [resolvable:$true] %s535
      %541 = dma.vmem_to_hbm [thread:$0]  %s536, 256, %s2, [#allocation4], 64, 64, 4
    $region17: #{tpu_custom_call.1} parent=1 // pred_fallthru
      _
    // Predicated region
    $region18: #{tpu_custom_call.1} parent=1 // pred_check
      _
    $region19: #{tpu_custom_call.1} parent=1 // pred_check_branch
      %543 = sbr.rel (0) target = $region21
    $region20: #{tpu_custom_call.1} parent=1 // pred_region
      %s545 = ssub.s32 128, 128
      %546 = vsyncadd [#allocation7], %s545
      %s548 = sshll.u32 [#allocation6], 4
      %s549 = int_to_ptr.vmem [resolvable:$true] %s548
      %551 = dma.vmem_to_hbm [thread:$0]  %s549, 128, %s3, [#allocation7]
    $region21: #{tpu_custom_call.1} parent=1 // pred_fallthru
      _
    // Predicated region
    $region22: #{tpu_custom_call.1} parent=1 // pred_check
      _
    $region23: #{tpu_custom_call.1} parent=1 // pred_check_branch
      %553 = sbr.rel (0) target = $region25
    $region24: #{tpu_custom_call.1} parent=1 // pred_region
      %554 = dma.done [#allocation4], 256
    $region25: #{tpu_custom_call.1} parent=1 // pred_fallthru
      _
    // Predicated region
    $region26: #{tpu_custom_call.1} parent=1 // pred_check
      _
    $region27: #{tpu_custom_call.1} parent=1 // pred_check_branch
      %556 = sbr.rel (0) target = $region29
    $region28: #{tpu_custom_call.1} parent=1 // pred_region
      %557 = dma.done [#allocation7], 128
    $region29: #{tpu_custom_call.1} parent=1 // pred_fallthru
      _
    %558 = vsyncpa [#allocation3], 1
    %559 = vsyncpa [#allocation4], 1
    %560 = vsyncpa [#allocation7], 1

</llo_original>
